<compile_context>
chip_gen: v5e
topology: v5e:2x2
jax: 0.10.0
libtpu: 0.0.40
codegen_flags: <defaults>
</compile_context>

<pallas_src>
import jax
import jax.numpy as jnp
from jax.experimental import pallas as pl
from jax.experimental.pallas import tpu as pltpu

ETA = 1e-6  # Constants.eta in the bivae codebase


def _round_up(x, m):
    return ((x + m - 1) // m) * m


def _make_kernel(lat_pad):
    """Joint-encoder kernel; `lat_pad` (padded head width, multiple of 128) is static."""

    def kernel(x1_ref, x2_ref,
               wf1_ref, wf2_ref, bf_ref,
               w2_ref, b2_ref,
               wh_ref, bh_ref,
               mu_ref, lv_ref):
        # Activations arrive f32; cast to bf16 on the VPU (hides under the input DMA).
        x1 = x1_ref[...].astype(jnp.bfloat16)
        x2 = x2_ref[...].astype(jnp.bfloat16)

        # ---- layer 1: (linear modality encoders folded into) Linear(joint_in, hidden) + ReLU
        h = jnp.dot(x1, wf1_ref[...], preferred_element_type=jnp.float32)
        h = h + jnp.dot(x2, wf2_ref[...], preferred_element_type=jnp.float32)
        h = jnp.maximum(h + bf_ref[...], 0.0)                       # f32 elementwise

        # ---- layer 2: extra_hidden_layer (num_hidden_layers - 1 = 1): Linear + ReLU
        h = jnp.dot(h.astype(jnp.bfloat16), w2_ref[...],
                    preferred_element_type=jnp.float32)
        h = jnp.maximum(h + b2_ref[...], 0.0)

        # ---- fused heads: one GEMM produces [mu_pad | logvar_pad] lane-concatenated,
        # each half 128-lane aligned -> clean vreg split, lane-dense stores.
        head = jnp.dot(h.astype(jnp.bfloat16), wh_ref[...],
                       preferred_element_type=jnp.float32) + bh_ref[...]
        mu_ref[...] = head[:, :lat_pad]
        lv_ref[...] = jnp.exp(0.5 * head[:, lat_pad:]) + ETA        # EUP exp, lv lanes only

    return kernel


def prepare_params(params):
    """One-time (per params load) folding / fusion / padding / bf16 cast of the weights.

    Keeps these 6+ small XLA ops out of the per-forward hot path.
    """
    (we1, be1), (we2, be2) = params["enc1"], params["enc2"]
    w1, b1 = params["joint1"]
    w2, b2 = params["joint2"]
    w21, b21 = params["fc21"]
    w22, b22 = params["fc22"]

    L1 = we1.shape[1]
    w1a, w1b = w1[:L1], w1[L1:]

    # Fold the linear modality encoders into the first joint layer (exact in math):
    #   relu(concat(x1@We1+be1, x2@We2+be2) @ W1 + b1)
    # = relu(x1 @ (We1@W1a) + x2 @ (We2@W1b) + (be1@W1a + be2@W1b + b1))
    # TODO(synk): fold is only valid while encoder_list members are pure Linear "mu"
    # heads; real nonlinear encoders must run as separate dots + activations in-kernel.
    wf1 = we1 @ w1a
    wf2 = we2 @ w1b
    bf = be1 @ w1a + be2 @ w1b + b1

    # Fuse fc21 / fc22 into one head GEMM, each head zero-padded to 128 lanes so the
    # kernel's output blocks are lane-dense (unmasked vector stores).
    LAT = w21.shape[1]
    LAT_PAD = _round_up(LAT, 128)
    pad_cols = lambda a: jnp.pad(a, ((0, 0), (0, LAT_PAD - a.shape[1])))
    wh = jnp.concatenate([pad_cols(w21), pad_cols(w22)], axis=1)   # (HID, 2*LAT_PAD)
    bh = jnp.concatenate([pad_cols(b21), pad_cols(b22)], axis=1)   # (1,   2*LAT_PAD)

    bf16 = lambda a: a.astype(jnp.bfloat16)
    arrays = {
        "wf1": bf16(wf1), "wf2": bf16(wf2), "bf": bf.astype(jnp.float32),
        "w2": bf16(w2), "b2": b2.astype(jnp.float32),
        "wh": bf16(wh), "bh": bh.astype(jnp.float32),
    }
    arrays = jax.block_until_ready(arrays)
    static = {"lat": LAT, "lat_pad": LAT_PAD, "hid": w2.shape[1]}
    return arrays, static


def _pick_tm(B):
    """Batch tile: big enough to amortize per-step overhead, multiple of 16 (bf16 pack),
    and (for large B) >= 2 grid steps so v7x's second TensorCore gets work."""
    if B <= 1024:
        return B                      # full batch; block dim equals array dim -> always legal
    return min(1024, _round_up(pl.cdiv(B, 2), 16))


def multiple_head_joint_forward(x_list, prepared):
    """x_list: [x_img (B,C,H,W), x_vec (B,D2)]. Returns (mu, lv)."""
    arrays, static = prepared
    x_img, x_vec = x_list
    B = x_img.shape[0]
    x1 = x_img.reshape(B, -1).astype(jnp.float32)   # flatten NCHW -> [B, C*H*W]
    x2 = x_vec.astype(jnp.float32)

    LAT, LAT_PAD, HID = static["lat"], static["lat_pad"], static["hid"]
    K1 = arrays["wf1"].shape[0]
    K2 = arrays["wf2"].shape[0]

    TM = _pick_tm(B)

    def row_spec(width):
        return pl.BlockSpec((TM, width), lambda i: (i, 0))

    def const_spec(shape):
        return pl.BlockSpec(shape, lambda i: (0, 0))

    out_mu, out_lv = pl.pallas_call(
        _make_kernel(LAT_PAD),
        out_shape=(jax.ShapeDtypeStruct((B, LAT_PAD), jnp.float32),
                   jax.ShapeDtypeStruct((B, LAT_PAD), jnp.float32)),
        grid=(pl.cdiv(B, TM),),
        in_specs=[
            row_spec(K1),                     # x1 tile (f32, pipelined over batch)
            row_spec(K2),                     # x2 tile (f32)
            const_spec((K1, HID)),            # folded encoder-0 + joint1 weight (bf16)
            const_spec((K2, HID)),            # folded encoder-1 + joint1 weight (bf16)
            const_spec((1, HID)),             # folded bias (f32)
            const_spec((HID, HID)),           # extra hidden layer weight (bf16)
            const_spec((1, HID)),             # extra hidden layer bias (f32)
            const_spec((HID, 2 * LAT_PAD)),   # fused, padded fc21|fc22 weight (bf16)
            const_spec((1, 2 * LAT_PAD)),     # fused, padded fc21|fc22 bias (f32)
        ],
        out_specs=(row_spec(LAT_PAD),         # mu  (lane-dense 128-wide block)
                   row_spec(LAT_PAD)),        # lv
        compiler_params=pltpu.CompilerParams(
            dimension_semantics=("parallel",),          # megacore / v7x 2nd TC
            vmem_limit_bytes=48 * 1024 * 1024),         # headroom below v7x 64 MiB
    )(x1, x2,
      arrays["wf1"], arrays["wf2"], arrays["bf"],
      arrays["w2"], arrays["b2"],
      arrays["wh"], arrays["bh"])

    # Leading-column (contiguous) slices; ideally consumed inside the caller's jit.
    return out_mu[:, :LAT], out_lv[:, :LAT]


def _init_linear(key, fan_in, fan_out):
    kw, kb = jax.random.split(key)
    w = jax.random.normal(kw, (fan_in, fan_out), jnp.float32) * 0.1
    b = jax.random.normal(kb, (1, fan_out), jnp.float32) * 0.1
    return w, b


def _reference(x_list, params):
    """Pure-JAX f32 reference matching the PyTorch forward."""
    x_img, x_vec = x_list
    B = x_img.shape[0]
    x1 = x_img.reshape(B, -1).astype(jnp.float32)
    x2 = x_vec.astype(jnp.float32)
    (we1, be1), (we2, be2) = params["enc1"], params["enc2"]
    w1, b1 = params["joint1"]
    w2, b2 = params["joint2"]
    w21, b21 = params["fc21"]
    w22, b22 = params["fc22"]
    z = jnp.concatenate([x1 @ we1 + be1, x2 @ we2 + be2], axis=1)
    h = jnp.maximum(z @ w1 + b1, 0.0)
    h = jnp.maximum(h @ w2 + b2, 0.0)
    return h @ w21 + b21, jnp.exp(0.5 * (h @ w22 + b22)) + ETA


if __name__ == "__main__":
    # Small synthetic config:
    #   2 modalities, latent dims [16, 16] -> joint_input_dim = 32
    #   hidden_dim = 32, args.num_hidden_layers = 2, args.latent_dim = 16
    B, C, H, W = 8, 4, 8, 8        # modality 0: image-like, NCHW
    D2 = 32                        # modality 1: flat vector
    L1, L2 = 16, 16                # per-modality latent dims
    HID, LAT = 32, 16

    key = jax.random.PRNGKey(0)
    k_x1, k_x2, k_e1, k_e2, k_j1, k_j2, k_21, k_22 = jax.random.split(key, 8)

    x_img = jax.random.normal(k_x1, (B, C, H, W), jnp.float32)
    x_vec = jax.random.normal(k_x2, (B, D2), jnp.float32)

    params = {
        "enc1":   _init_linear(k_e1, C * H * W, L1),   # synthetic modality encoder 0
        "enc2":   _init_linear(k_e2, D2, L2),          # synthetic modality encoder 1
        "joint1": _init_linear(k_j1, L1 + L2, HID),    # Linear(joint_input_dim, hidden)
        "joint2": _init_linear(k_j2, HID, HID),        # extra_hidden_layer
        "fc21":   _init_linear(k_21, HID, LAT),
        "fc22":   _init_linear(k_22, HID, LAT),
    }

    prepared = prepare_params(params)                  # one-time fold/fuse/pad/cast
    mu, lv = multiple_head_joint_forward([x_img, x_vec], prepared)
    jax.block_until_ready((mu, lv))

    mu_ref, lv_ref = _reference([x_img, x_vec], params)
    # bf16 MXU operands + folded-weight double rounding -> relaxed tolerance vs f32 ref.
    assert mu.shape == mu_ref.shape and lv.shape == lv_ref.shape
    assert jnp.allclose(mu, mu_ref, atol=5e-2, rtol=5e-2)
    assert jnp.allclose(lv, lv_ref, atol=5e-2, rtol=5e-2)

    # TODO(synk): encoder_list / per-modality encoders are external to this module;
    # they are modeled (and folded) as deterministic Linear "mu" heads.
    print("KERNEL_OK")
</pallas_src>

<mosaic_0001>
module attributes {stable_mosaic.version = 11 : i64} {
  func.func @kernel(%arg0: i32, %arg1: memref<8x256xf32, #tpu.memory_space<vmem>>, %arg2: memref<8x32xf32, #tpu.memory_space<vmem>>, %arg3: memref<256x32xbf16, #tpu.memory_space<vmem>>, %arg4: memref<32x32xbf16, #tpu.memory_space<vmem>>, %arg5: memref<1x32xf32, #tpu.memory_space<vmem>>, %arg6: memref<32x32xbf16, #tpu.memory_space<vmem>>, %arg7: memref<1x32xf32, #tpu.memory_space<vmem>>, %arg8: memref<32x256xbf16, #tpu.memory_space<vmem>>, %arg9: memref<1x256xf32, #tpu.memory_space<vmem>>, %arg10: memref<8x128xf32, #tpu.memory_space<vmem>>, %arg11: memref<8x128xf32, #tpu.memory_space<vmem>>) attributes {dimension_semantics = [#tpu.dimension_semantics<parallel>], iteration_bounds = array<i64: 1>, scalar_prefetch = 0 : i64, scratch_operands = 0 : i64, tpu.core_type = #tpu.core_type<tc>, window_params = [{transform_indices = @transform_0, window_bounds = array<i64: 8, 256>}, {transform_indices = @transform_1, window_bounds = array<i64: 8, 32>}, {pipeline_mode = #tpu.pipeline_mode<synchronous>, transform_indices = @transform_2, window_bounds = array<i64: 256, 32>}, {pipeline_mode = #tpu.pipeline_mode<synchronous>, transform_indices = @transform_3, window_bounds = array<i64: 32, 32>}, {pipeline_mode = #tpu.pipeline_mode<synchronous>, transform_indices = @transform_4, window_bounds = array<i64: 1, 32>}, {pipeline_mode = #tpu.pipeline_mode<synchronous>, transform_indices = @transform_5, window_bounds = array<i64: 32, 32>}, {pipeline_mode = #tpu.pipeline_mode<synchronous>, transform_indices = @transform_6, window_bounds = array<i64: 1, 32>}, {pipeline_mode = #tpu.pipeline_mode<synchronous>, transform_indices = @transform_7, window_bounds = array<i64: 32, 256>}, {pipeline_mode = #tpu.pipeline_mode<synchronous>, transform_indices = @transform_8, window_bounds = array<i64: 1, 256>}, {transform_indices = @transform_9, window_bounds = array<i64: 8, 128>}, {transform_indices = @transform_10, window_bounds = array<i64: 8, 128>}]} {
    %c0 = arith.constant 0 : index
    %c0_0 = arith.constant 0 : index
    %0 = vector.load %arg1[%c0, %c0_0] : memref<8x256xf32, #tpu.memory_space<vmem>>, vector<8x256xf32>
    %1 = arith.truncf %0 : vector<8x256xf32> to vector<8x256xbf16>
    %c0_1 = arith.constant 0 : index
    %c0_2 = arith.constant 0 : index
    %2 = vector.load %arg2[%c0_1, %c0_2] : memref<8x32xf32, #tpu.memory_space<vmem>>, vector<8x32xf32>
    %3 = arith.truncf %2 : vector<8x32xf32> to vector<8x32xbf16>
    %c0_3 = arith.constant 0 : index
    %c0_4 = arith.constant 0 : index
    %4 = vector.load %arg3[%c0_3, %c0_4] : memref<256x32xbf16, #tpu.memory_space<vmem>>, vector<256x32xbf16>
    %cst = arith.constant dense<0.000000e+00> : vector<8x32xf32>
    %5 = tpu.matmul %1, %4, %cst {dimension_numbers = #tpu.dot_dimension_numbers<[1], [0], [0], [1], [0, 0, 1, 1], [], []>} : vector<8x256xbf16>, vector<256x32xbf16>, vector<8x32xf32> -> vector<8x32xf32>
    %c0_5 = arith.constant 0 : index
    %c0_6 = arith.constant 0 : index
    %6 = vector.load %arg4[%c0_5, %c0_6] : memref<32x32xbf16, #tpu.memory_space<vmem>>, vector<32x32xbf16>
    %cst_7 = arith.constant dense<0.000000e+00> : vector<8x32xf32>
    %7 = tpu.matmul %3, %6, %cst_7 {dimension_numbers = #tpu.dot_dimension_numbers<[1], [0], [0], [1], [0, 0, 1, 1], [], []>} : vector<8x32xbf16>, vector<32x32xbf16>, vector<8x32xf32> -> vector<8x32xf32>
    %8 = arith.addf %5, %7 : vector<8x32xf32>
    %c0_8 = arith.constant 0 : index
    %c0_9 = arith.constant 0 : index
    %9 = vector.load %arg5[%c0_8, %c0_9] : memref<1x32xf32, #tpu.memory_space<vmem>>, vector<1x32xf32>
    %10 = vector.broadcast %9 : vector<1x32xf32> to vector<8x32xf32>
    %11 = arith.addf %8, %10 : vector<8x32xf32>
    %cst_10 = arith.constant 0.000000e+00 : f32
    %12 = vector.broadcast %cst_10 : f32 to vector<8x32xf32>
    %13 = arith.maximumf %11, %12 : vector<8x32xf32>
    %14 = arith.truncf %13 : vector<8x32xf32> to vector<8x32xbf16>
    %c0_11 = arith.constant 0 : index
    %c0_12 = arith.constant 0 : index
    %15 = vector.load %arg6[%c0_11, %c0_12] : memref<32x32xbf16, #tpu.memory_space<vmem>>, vector<32x32xbf16>
    %cst_13 = arith.constant dense<0.000000e+00> : vector<8x32xf32>
    %16 = tpu.matmul %14, %15, %cst_13 {dimension_numbers = #tpu.dot_dimension_numbers<[1], [0], [0], [1], [0, 0, 1, 1], [], []>} : vector<8x32xbf16>, vector<32x32xbf16>, vector<8x32xf32> -> vector<8x32xf32>
    %c0_14 = arith.constant 0 : index
    %c0_15 = arith.constant 0 : index
    %17 = vector.load %arg7[%c0_14, %c0_15] : memref<1x32xf32, #tpu.memory_space<vmem>>, vector<1x32xf32>
    %18 = vector.broadcast %17 : vector<1x32xf32> to vector<8x32xf32>
    %19 = arith.addf %16, %18 : vector<8x32xf32>
    %cst_16 = arith.constant 0.000000e+00 : f32
    %20 = vector.broadcast %cst_16 : f32 to vector<8x32xf32>
    %21 = arith.maximumf %19, %20 : vector<8x32xf32>
    %22 = arith.truncf %21 : vector<8x32xf32> to vector<8x32xbf16>
    %c0_17 = arith.constant 0 : index
    %c0_18 = arith.constant 0 : index
    %23 = vector.load %arg8[%c0_17, %c0_18] : memref<32x256xbf16, #tpu.memory_space<vmem>>, vector<32x256xbf16>
    %cst_19 = arith.constant dense<0.000000e+00> : vector<8x256xf32>
    %24 = tpu.matmul %22, %23, %cst_19 {dimension_numbers = #tpu.dot_dimension_numbers<[1], [0], [0], [1], [0, 0, 1, 1], [], []>} : vector<8x32xbf16>, vector<32x256xbf16>, vector<8x256xf32> -> vector<8x256xf32>
    %c0_20 = arith.constant 0 : index
    %c0_21 = arith.constant 0 : index
    %25 = vector.load %arg9[%c0_20, %c0_21] : memref<1x256xf32, #tpu.memory_space<vmem>>, vector<1x256xf32>
    %26 = vector.broadcast %25 : vector<1x256xf32> to vector<8x256xf32>
    %27 = arith.addf %24, %26 : vector<8x256xf32>
    %28 = vector.extract_strided_slice %27 {offsets = [0, 0], sizes = [8, 128], strides = [1, 1]} : vector<8x256xf32> to vector<8x128xf32>
    %c0_22 = arith.constant 0 : index
    %c0_23 = arith.constant 0 : index
    %29 = vector.load %arg10[%c0_22, %c0_23] : memref<8x128xf32, #tpu.memory_space<vmem>>, vector<8x128xf32>
    tpu.vector_store %arg10[%c0_22, %c0_23], %28 {strides = array<i32>} : memref<8x128xf32, #tpu.memory_space<vmem>>, vector<8x128xf32>,
    %30 = vector.extract_strided_slice %27 {offsets = [0, 128], sizes = [8, 128], strides = [1, 1]} : vector<8x256xf32> to vector<8x128xf32>
    %cst_24 = arith.constant 5.000000e-01 : f32
    %31 = vector.broadcast %cst_24 : f32 to vector<8x128xf32>
    %32 = arith.mulf %31, %30 : vector<8x128xf32>
    %33 = math.exp %32 : vector<8x128xf32>
    %cst_25 = arith.constant 9.99999997E-7 : f32
    %34 = vector.broadcast %cst_25 : f32 to vector<8x128xf32>
    %35 = arith.addf %33, %34 : vector<8x128xf32>
    %c0_26 = arith.constant 0 : index
    %c0_27 = arith.constant 0 : index
    %36 = vector.load %arg11[%c0_26, %c0_27] : memref<8x128xf32, #tpu.memory_space<vmem>>, vector<8x128xf32>
    tpu.vector_store %arg11[%c0_26, %c0_27], %35 {strides = array<i32>} : memref<8x128xf32, #tpu.memory_space<vmem>>, vector<8x128xf32>,
    return
  }
  func.func @transform_0(%arg0: i32) -> (i32, i32) {
    %c0_i32 = arith.constant 0 : i32
    %c0_i32_0 = arith.constant 0 : i32
    return %arg0, %c0_i32 : i32, i32
  }
  func.func @transform_1(%arg0: i32) -> (i32, i32) {
    %c0_i32 = arith.constant 0 : i32
    %c0_i32_0 = arith.constant 0 : i32
    return %arg0, %c0_i32 : i32, i32
  }
  func.func @transform_2(%arg0: i32) -> (i32, i32) {
    %c0_i32 = arith.constant 0 : i32
    %c0_i32_0 = arith.constant 0 : i32
    %c0_i32_1 = arith.constant 0 : i32
    return %c0_i32, %c0_i32_0 : i32, i32
  }
  func.func @transform_3(%arg0: i32) -> (i32, i32) {
    %c0_i32 = arith.constant 0 : i32
    %c0_i32_0 = arith.constant 0 : i32
    %c0_i32_1 = arith.constant 0 : i32
    return %c0_i32, %c0_i32_0 : i32, i32
  }
  func.func @transform_4(%arg0: i32) -> (i32, i32) {
    %c0_i32 = arith.constant 0 : i32
    %c0_i32_0 = arith.constant 0 : i32
    %c0_i32_1 = arith.constant 0 : i32
    return %c0_i32, %c0_i32_0 : i32, i32
  }
  func.func @transform_5(%arg0: i32) -> (i32, i32) {
    %c0_i32 = arith.constant 0 : i32
    %c0_i32_0 = arith.constant 0 : i32
    %c0_i32_1 = arith.constant 0 : i32
    return %c0_i32, %c0_i32_0 : i32, i32
  }
  func.func @transform_6(%arg0: i32) -> (i32, i32) {
    %c0_i32 = arith.constant 0 : i32
    %c0_i32_0 = arith.constant 0 : i32
    %c0_i32_1 = arith.constant 0 : i32
    return %c0_i32, %c0_i32_0 : i32, i32
  }
  func.func @transform_7(%arg0: i32) -> (i32, i32) {
    %c0_i32 = arith.constant 0 : i32
    %c0_i32_0 = arith.constant 0 : i32
    %c0_i32_1 = arith.constant 0 : i32
    return %c0_i32, %c0_i32_0 : i32, i32
  }
  func.func @transform_8(%arg0: i32) -> (i32, i32) {
    %c0_i32 = arith.constant 0 : i32
    %c0_i32_0 = arith.constant 0 : i32
    %c0_i32_1 = arith.constant 0 : i32
    return %c0_i32, %c0_i32_0 : i32, i32
  }
  func.func @transform_9(%arg0: i32) -> (i32, i32) {
    %c0_i32 = arith.constant 0 : i32
    %c0_i32_0 = arith.constant 0 : i32
    return %arg0, %c0_i32 : i32, i32
  }
  func.func @transform_10(%arg0: i32) -> (i32, i32) {
    %c0_i32 = arith.constant 0 : i32
    %c0_i32_0 = arith.constant 0 : i32
    return %arg0, %c0_i32 : i32, i32
  }
}

</mosaic_0001>

<llo_original>
// kernel: tpu_custom_call.1
$region0: #{tpu_custom_call.1}
  #allocation0 [shape = 'u32[]', space=smem, size = 0x4, offset = 0x4, fixed_abs, tag = 'smem constant byte address 0x4 - core index']
  #allocation1 [shape = 'u32[72,128]{1,0:T(1,128)}', space=vmem, size = 0x9000, scoped, tag = 'internal scratch']
  %s0 = inlined_call_operand.vmem [shape: f32[8,256], index: 0, kind: input, shape index: {}]
  %s1 = inlined_call_operand.vmem [shape: f32[8,32], index: 1, kind: input, shape index: {}]
  %s2 = inlined_call_operand.vmem [shape: bf16[256,32], index: 2, kind: input, shape index: {}]
  %s3 = inlined_call_operand.vmem [shape: bf16[32,32], index: 3, kind: input, shape index: {}]
  %s4 = inlined_call_operand.vmem [shape: f32[1,32], index: 4, kind: input, shape index: {}]
  %s5 = inlined_call_operand.vmem [shape: bf16[32,32], index: 5, kind: input, shape index: {}]
  %s6 = inlined_call_operand.vmem [shape: f32[1,32], index: 6, kind: input, shape index: {}]
  %s7 = inlined_call_operand.vmem [shape: bf16[32,256], index: 7, kind: input, shape index: {}]
  %s8 = inlined_call_operand.vmem [shape: f32[1,256], index: 8, kind: input, shape index: {}]
  %s9 = inlined_call_operand.hbm [shape: f32[8,128], index: 9, kind: output, shape index: {0}]
  %s10 = inlined_call_operand.hbm [shape: f32[8,128], index: 10, kind: output, shape index: {1}]
  %11 = xla_tuple %s9, %s10
  %s12 = sld [smem:[#allocation0]]
  $region54: #{tpu_custom_call.1} parent=0
    _
  %s14 = ssub.s32 1, %s12
  %s15 = scalar_select 0, %s14, %s12
  $region1: #{tpu_custom_call.1} parent=0
    #allocation2 [shape = 'u8[4096]{0}', space=vmem, size = 0x1000, scoped, tag = 'output window, operand 0, single buffered']
    #allocation3 [shape = 's32[1]{0}', space=sflag, size = 0x4, scoped, tag = 'scoped memory for tpu_custom_call.1']
    #allocation4 [shape = 'u8[4096]{0}', space=vmem, size = 0x1000, scoped, tag = 'output window, operand 1, single buffered']
    #allocation5 [shape = 's32[1]{0}', space=sflag, size = 0x4, scoped, tag = 'scoped memory for tpu_custom_call.1']
    %16 = vsyncpa [#allocation3], 0
    %17 = vsyncpa [#allocation5], 0
    // Predicated region
    $region2: #{tpu_custom_call.1} parent=1 // pred_check
      _
    $region3: #{tpu_custom_call.1} parent=1 // pred_check_branch
      %19 = sbr.rel (0) target = $region5
    $region4: #{tpu_custom_call.1} parent=1 // pred_region
      _
    $region5: #{tpu_custom_call.1} parent=1 // pred_fallthru
      _
    // Predicated region
    $region6: #{tpu_custom_call.1} parent=1 // pred_check
      _
    $region7: #{tpu_custom_call.1} parent=1 // pred_check_branch
      %21 = sbr.rel (0) target = $region9
    $region8: #{tpu_custom_call.1} parent=1 // pred_region
      _
    $region9: #{tpu_custom_call.1} parent=1 // pred_fallthru
      _
    // Predicated region
    $region10: #{tpu_custom_call.1} parent=1 // pred_check
      _
    $region11: #{tpu_custom_call.1} parent=1 // pred_check_branch
      %23 = sbr.rel (0) target = $region13
    $region12: #{tpu_custom_call.1} parent=1 // pred_region
      _
    $region13: #{tpu_custom_call.1} parent=1 // pred_fallthru
      _
    // Predicated region
    $region14: #{tpu_custom_call.1} parent=1 // pred_check
      _
    $region15: #{tpu_custom_call.1} parent=1 // pred_check_branch
      %25 = sbr.rel (0) target = $region17
    $region16: #{tpu_custom_call.1} parent=1 // pred_region
      _
    $region17: #{tpu_custom_call.1} parent=1 // pred_fallthru
      _
    // Predicated region
    $region18: #{tpu_custom_call.1} parent=1 // pred_check
      _
    $region19: #{tpu_custom_call.1} parent=1 // pred_check_branch
      %27 = sbr.rel (0) target = $region21
    $region20: #{tpu_custom_call.1} parent=1 // pred_region
      _
    $region21: #{tpu_custom_call.1} parent=1 // pred_fallthru
      _
    // Predicated region
    $region22: #{tpu_custom_call.1} parent=1 // pred_check
      _
    $region23: #{tpu_custom_call.1} parent=1 // pred_check_branch
      %29 = sbr.rel (0) target = $region25
    $region24: #{tpu_custom_call.1} parent=1 // pred_region
      _
    $region25: #{tpu_custom_call.1} parent=1 // pred_fallthru
      _
    // Predicated region
    $region26: #{tpu_custom_call.1} parent=1 // pred_check
      _
    $region27: #{tpu_custom_call.1} parent=1 // pred_check_branch
      %31 = sbr.rel (0) target = $region29
    $region28: #{tpu_custom_call.1} parent=1 // pred_region
      _
    $region29: #{tpu_custom_call.1} parent=1 // pred_fallthru
      _
    // Predicated region
    $region30: #{tpu_custom_call.1} parent=1 // pred_check
      _
    $region31: #{tpu_custom_call.1} parent=1 // pred_check_branch
      %33 = sbr.rel (0) target = $region33
    $region32: #{tpu_custom_call.1} parent=1 // pred_region
      _
    $region33: #{tpu_custom_call.1} parent=1 // pred_fallthru
      _
    // Predicated region
    $region34: #{tpu_custom_call.1} parent=1 // pred_check
      _
    $region35: #{tpu_custom_call.1} parent=1 // pred_check_branch
      %35 = sbr.rel (0) target = $region37
    $region36: #{tpu_custom_call.1} parent=1 // pred_region
      _
    $region37: #{tpu_custom_call.1} parent=1 // pred_fallthru
      _
    %v37 = vld [vmem:[%s0] sm:$0xff]
    %v38 = vld [vmem:[%s0 + $0x8] sm:$0xff]
    %v39 = vpack.c.bf16 %v37, %v37
    %v40 = vpack.c.bf16 %v38, %v38
    %v41 = vld [vmem:[%s1] sm:$0xff]
    %v42 = vpack.c.bf16 %v41, %v41
    %v43 = vld [vmem:[%s2] sm:$0xf]
    %v44 = vld [vmem:[%s2 + $0x4] sm:$0xf]
    %v45 = vld [vmem:[%s2 + $0x8] sm:$0xf]
    %v46 = vld [vmem:[%s2 + $0xc] sm:$0xf]
    %v47 = vld [vmem:[%s2 + $0x10] sm:$0xf]
    %v48 = vld [vmem:[%s2 + $0x14] sm:$0xf]
    %v49 = vld [vmem:[%s2 + $0x18] sm:$0xf]
    %v50 = vld [vmem:[%s2 + $0x1c] sm:$0xf]
    %v51 = vld [vmem:[%s2 + $0x20] sm:$0xf]
    %v52 = vld [vmem:[%s2 + $0x24] sm:$0xf]
    %v53 = vld [vmem:[%s2 + $0x28] sm:$0xf]
    %v54 = vld [vmem:[%s2 + $0x2c] sm:$0xf]
    %v55 = vld [vmem:[%s2 + $0x30] sm:$0xf]
    %v56 = vld [vmem:[%s2 + $0x34] sm:$0xf]
    %v57 = vld [vmem:[%s2 + $0x38] sm:$0xf]
    %v58 = vld [vmem:[%s2 + $0x3c] sm:$0xf]
    %v59 = vld [vmem:[%s2 + $0x40] sm:$0xf]
    %v60 = vld [vmem:[%s2 + $0x44] sm:$0xf]
    %v61 = vld [vmem:[%s2 + $0x48] sm:$0xf]
    %v62 = vld [vmem:[%s2 + $0x4c] sm:$0xf]
    %v63 = vld [vmem:[%s2 + $0x50] sm:$0xf]
    %v64 = vld [vmem:[%s2 + $0x54] sm:$0xf]
    %v65 = vld [vmem:[%s2 + $0x58] sm:$0xf]
    %v66 = vld [vmem:[%s2 + $0x5c] sm:$0xf]
    %v67 = vld [vmem:[%s2 + $0x60] sm:$0xf]
    %v68 = vld [vmem:[%s2 + $0x64] sm:$0xf]
    %v69 = vld [vmem:[%s2 + $0x68] sm:$0xf]
    %v70 = vld [vmem:[%s2 + $0x6c] sm:$0xf]
    %v71 = vld [vmem:[%s2 + $0x70] sm:$0xf]
    %v72 = vld [vmem:[%s2 + $0x74] sm:$0xf]
    %v73 = vld [vmem:[%s2 + $0x78] sm:$0xf]
    %v74 = vld [vmem:[%s2 + $0x7c] sm:$0xf]
    %v75 = vld [vmem:[%s3] sm:$0xf]
    %v76 = vld [vmem:[%s3 + $0x4] sm:$0xf]
    %v77 = vld [vmem:[%s3 + $0x8] sm:$0xf]
    %v78 = vld [vmem:[%s3 + $0xc] sm:$0xf]
    %v83 = vunpack.c.l.b16 %v75
    %v84 = vunpack.c.l.b16 %v76
    %v85 = vunpack.c.l.b16 %v77
    %v86 = vunpack.c.l.b16 %v78
    %v87 = vpack.c.b16 %v84, %v83
    %v88 = vpack.c.b16 %v86, %v85
    %vm91 = vcmask 261120
    %v93 = vsel %vm91, %v42, 0
    %95 = vmatpush.bf16.msra.mxu0 0
    %96 = vmatpush.bf16.msra.mxu0 0
    %97 = vmatpush.bf16.msra.mxu0 0
    %98 = vmatpush.bf16.msra.mxu0 0
    %99 = vmatpush.bf16.msra.mxu0 0
    %100 = vmatpush.bf16.msra.mxu0 0
    %101 = vmatpush.bf16.msra.mxu0 %v88
    %102 = vmatpush.bf16.msra.mxu0 %v87
    %103 = vmatmul.bf16.gmra.mxu0 %v93
    %v104 = vpop.f32.mrf.mxu0
    %v105 = vadd.f32 0.0, %v104
    %v106 = vpop.f32.mrf.mxu0
    %107 = vdwg.mxu0
    %v140 = vunpack.c.l.b16 %v43
    %v141 = vunpack.c.l.b16 %v44
    %v142 = vunpack.c.l.b16 %v45
    %v143 = vunpack.c.l.b16 %v46
    %v144 = vunpack.c.l.b16 %v47
    %v145 = vunpack.c.l.b16 %v48
    %v146 = vunpack.c.l.b16 %v49
    %v147 = vunpack.c.l.b16 %v50
    %v148 = vunpack.c.l.b16 %v51
    %v149 = vunpack.c.l.b16 %v52
    %v150 = vunpack.c.l.b16 %v53
    %v151 = vunpack.c.l.b16 %v54
    %v152 = vunpack.c.l.b16 %v55
    %v153 = vunpack.c.l.b16 %v56
    %v154 = vunpack.c.l.b16 %v57
    %v155 = vunpack.c.l.b16 %v58
    %v156 = vunpack.c.l.b16 %v59
    %v157 = vunpack.c.l.b16 %v60
    %v158 = vunpack.c.l.b16 %v61
    %v159 = vunpack.c.l.b16 %v62
    %v160 = vunpack.c.l.b16 %v63
    %v161 = vunpack.c.l.b16 %v64
    %v162 = vunpack.c.l.b16 %v65
    %v163 = vunpack.c.l.b16 %v66
    %v164 = vunpack.c.l.b16 %v67
    %v165 = vunpack.c.l.b16 %v68
    %v166 = vunpack.c.l.b16 %v69
    %v167 = vunpack.c.l.b16 %v70
    %v168 = vunpack.c.l.b16 %v71
    %v169 = vunpack.c.l.b16 %v72
    %v170 = vunpack.c.l.b16 %v73
    %v171 = vunpack.c.l.b16 %v74
    %v172 = vpack.c.b16 %v141, %v140
    %v173 = vpack.c.b16 %v143, %v142
    %v174 = vpack.c.b16 %v145, %v144
    %v175 = vpack.c.b16 %v147, %v146
    %v176 = vpack.c.b16 %v149, %v148
    %v177 = vpack.c.b16 %v151, %v150
    %v178 = vpack.c.b16 %v153, %v152
    %v179 = vpack.c.b16 %v155, %v154
    %v180 = vpack.c.b16 %v157, %v156
    %v181 = vpack.c.b16 %v159, %v158
    %v182 = vpack.c.b16 %v161, %v160
    %v183 = vpack.c.b16 %v163, %v162
    %v184 = vpack.c.b16 %v165, %v164
    %v185 = vpack.c.b16 %v167, %v166
    %v186 = vpack.c.b16 %v169, %v168
    %v187 = vpack.c.b16 %v171, %v170
    %204 = vmatpush.bf16.msra.mxu0 %v179
    %205 = vmatpush.bf16.msra.mxu0 %v178
    %206 = vmatpush.bf16.msra.mxu0 %v177
    %207 = vmatpush.bf16.msra.mxu0 %v176
    %208 = vmatpush.bf16.msra.mxu0 %v175
    %209 = vmatpush.bf16.msra.mxu0 %v174
    %210 = vmatpush.bf16.msra.mxu0 %v173
    %211 = vmatpush.bf16.msra.mxu0 %v172
    %212 = vmatmul.bf16.gmra.mxu0 %v39
    %v213 = vpop.f32.mrf.mxu0
    %v214 = vadd.f32 %v105, %v213
    %v215 = vpop.f32.mrf.mxu0
    %216 = vdwg.mxu0
    %217 = vmatpush.bf16.msra.mxu0 %v187
    %218 = vmatpush.bf16.msra.mxu0 %v186
    %219 = vmatpush.bf16.msra.mxu0 %v185
    %220 = vmatpush.bf16.msra.mxu0 %v184
    %221 = vmatpush.bf16.msra.mxu0 %v183
    %222 = vmatpush.bf16.msra.mxu0 %v182
    %223 = vmatpush.bf16.msra.mxu0 %v181
    %224 = vmatpush.bf16.msra.mxu0 %v180
    %225 = vmatmul.bf16.gmra.mxu0 %v40
    %v226 = vpop.f32.mrf.mxu0
    %v227 = vadd.f32 %v214, %v226
    %v228 = vpop.f32.mrf.mxu0
    %229 = vdwg.mxu0
    %v230 = vld [vmem:[%s4] sm:$0x1]
    %v232 = vperm.slane %v230, 0
    %v234 = vadd.f32 %v227, %v232
    %v235 = vmax.f32 %v234, 0.0
    %v236 = vpack.c.bf16 %v235, %v235
    %v237 = vld [vmem:[%s5] sm:$0xf]
    %v238 = vld [vmem:[%s5 + $0x4] sm:$0xf]
    %v239 = vld [vmem:[%s5 + $0x8] sm:$0xf]
    %v240 = vld [vmem:[%s5 + $0xc] sm:$0xf]
    %v241 = vld [vmem:[%s6] sm:$0x1]
    %v243 = vperm.slane %v241, 0
    %v249 = vunpack.c.l.b16 %v237
    %v250 = vunpack.c.l.b16 %v238
    %v251 = vunpack.c.l.b16 %v239
    %v252 = vunpack.c.l.b16 %v240
    %v253 = vpack.c.b16 %v250, %v249
    %v254 = vpack.c.b16 %v252, %v251
    %v258 = vsel %vm91, %v236, 0
    %260 = vmatpush.bf16.msra.mxu0 0
    %261 = vmatpush.bf16.msra.mxu0 0
    %262 = vmatpush.bf16.msra.mxu0 0
    %263 = vmatpush.bf16.msra.mxu0 0
    %264 = vmatpush.bf16.msra.mxu0 0
    %265 = vmatpush.bf16.msra.mxu0 0
    %266 = vmatpush.bf16.msra.mxu0 %v254
    %267 = vmatpush.bf16.msra.mxu0 %v253
    %268 = vmatmul.bf16.gmra.mxu0 %v258
    %v269 = vpop.f32.mrf.mxu0
    %v270 = vadd.f32 %v243, %v269
    %v271 = vpop.f32.mrf.mxu0
    %272 = vdwg.mxu0
    %v273 = vmax.f32 %v270, 0.0
    %v274 = vpack.c.bf16 %v273, %v273
    %v275 = vld [vmem:[%s7] sm:$0xff]
    %v276 = vld [vmem:[%s7 + $0x8] sm:$0xff]
    %v277 = vld [vmem:[%s7 + $0x10] sm:$0xff]
    %v278 = vld [vmem:[%s7 + $0x18] sm:$0xff]
    %v279 = vld [vmem:[%s8] sm:$0x3]
    %v281 = vperm.slane %v279, 0
    %v282 = vperm.slane %v279, 1
    %v289 = vunpack.c.l.b16 %v275
    %v290 = vunpack.c.h.b16 %v275
    %v291 = vunpack.c.l.b16 %v276
    %v292 = vunpack.c.h.b16 %v276
    %v293 = vunpack.c.l.b16 %v277
    %v294 = vunpack.c.h.b16 %v277
    %v295 = vunpack.c.l.b16 %v278
    %v296 = vunpack.c.h.b16 %v278
    %v297 = vpack.c.b16 %v291, %v289
    %v298 = vpack.c.b16 %v292, %v290
    %v299 = vpack.c.b16 %v295, %v293
    %v300 = vpack.c.b16 %v296, %v294
    %v306 = vsel %vm91, %v274, 0
    %308 = vmatpush.bf16.msra.mxu0 0
    %309 = vmatpush.bf16.msra.mxu0 0
    %310 = vmatpush.bf16.msra.mxu0 0
    %311 = vmatpush.bf16.msra.mxu0 0
    %312 = vmatpush.bf16.msra.mxu0 0
    %313 = vmatpush.bf16.msra.mxu0 0
    %314 = vmatpush.bf16.msra.mxu0 %v299
    %315 = vmatpush.bf16.msra.mxu0 %v297
    %316 = vmatmul.bf16.gmra.mxu0 %v306
    %v317 = vpop.f32.mrf.mxu0
    %v318 = vadd.f32 %v281, %v317
    %v319 = vpop.f32.mrf.mxu0
    %320 = vdwg.mxu0
    %321 = vmatpush.bf16.msra.mxu0 0
    %322 = vmatpush.bf16.msra.mxu0 0
    %323 = vmatpush.bf16.msra.mxu0 0
    %324 = vmatpush.bf16.msra.mxu0 0
    %325 = vmatpush.bf16.msra.mxu0 0
    %326 = vmatpush.bf16.msra.mxu0 0
    %327 = vmatpush.bf16.msra.mxu0 %v300
    %328 = vmatpush.bf16.msra.mxu0 %v298
    %329 = vmatmul.bf16.gmra.mxu0 %v306
    %v330 = vpop.f32.mrf.mxu0
    %v331 = vadd.f32 %v282, %v330
    %v332 = vpop.f32.mrf.mxu0
    %333 = vdwg.mxu0
    %334 = vst [vmem:[#allocation2] sm:$0xff] %v318
    %v335 = vmul.f32 %v331, 0.5
    %v336 = vmul.f32 %v335, 1.442695
    %v337 = vpow.pop %v336
    %v338 = vadd.f32 %v337, 1e-06
    %339 = vst [vmem:[#allocation4] sm:$0xff] %v338
    // Predicated region
    $region38: #{tpu_custom_call.1} parent=1 // pred_check
      _
    $region39: #{tpu_custom_call.1} parent=1 // pred_check_branch
      %341 = sbr.rel (0) target = $region41
    $region40: #{tpu_custom_call.1} parent=1 // pred_region
      %343 = vsyncadd [#allocation3], 0
      %s345 = sshll.u32 [#allocation2], 4
      %s346 = int_to_ptr.vmem [resolvable:$true] %s345
      %s347 = sshll.u32 %s9, 4
      %s348 = int_to_ptr.hbm [resolvable:$true] %s347
      %350 = dma.vmem_to_hbm [thread:$0]  %s346, 128, %s348, [#allocation3]
    $region41: #{tpu_custom_call.1} parent=1 // pred_fallthru
      _
    // Predicated region
    $region42: #{tpu_custom_call.1} parent=1 // pred_check
      _
    $region43: #{tpu_custom_call.1} parent=1 // pred_check_branch
      %352 = sbr.rel (0) target = $region45
    $region44: #{tpu_custom_call.1} parent=1 // pred_region
      %354 = vsyncadd [#allocation5], 0
      %s356 = sshll.u32 [#allocation4], 4
      %s357 = int_to_ptr.vmem [resolvable:$true] %s356
      %s358 = sshll.u32 %s10, 4
      %s359 = int_to_ptr.hbm [resolvable:$true] %s358
      %361 = dma.vmem_to_hbm [thread:$0]  %s357, 128, %s359, [#allocation5]
    $region45: #{tpu_custom_call.1} parent=1 // pred_fallthru
      _
    // Predicated region
    $region46: #{tpu_custom_call.1} parent=1 // pred_check
      _
    $region47: #{tpu_custom_call.1} parent=1 // pred_check_branch
      %363 = sbr.rel (0) target = $region49
    $region48: #{tpu_custom_call.1} parent=1 // pred_region
      %365 = dma.done [#allocation3], 128
    $region49: #{tpu_custom_call.1} parent=1 // pred_fallthru
      _
    // Predicated region
    $region50: #{tpu_custom_call.1} parent=1 // pred_check
      _
    $region51: #{tpu_custom_call.1} parent=1 // pred_check_branch
      %367 = sbr.rel (0) target = $region53
    $region52: #{tpu_custom_call.1} parent=1 // pred_region
      %369 = dma.done [#allocation5], 128
    $region53: #{tpu_custom_call.1} parent=1 // pred_fallthru
      _
    %370 = vsyncpa [#allocation3], 1
    %371 = vsyncpa [#allocation5], 1

</llo_original>
